<compile_context>
chip_gen: v7x
topology: tpu7x:2x2x1
jax: 0.10.0
libtpu: 0.0.40
codegen_flags: <defaults>
</compile_context>

<pallas_src>
import functools

import jax
import jax.numpy as jnp
from jax.experimental import pallas as pl
from jax.experimental.pallas import tpu as pltpu


def _auto_tiles(B, D, elem_bytes, budget_bytes):
    """Pick (tm, tk): batch-tile rows and D-tile lanes for an x tile <= budget."""
    if 8 * D * elem_bytes <= budget_bytes:
        # Full-D tiles: single reduction step, no D grid axis needed.
        tk = D
        tm = max(8, (budget_bytes // (D * elem_bytes)) // 8 * 8)
    else:
        # D too wide for even an 8-row tile: tile the reduction axis too.
        tk = max(128, (budget_bytes // (8 * elem_bytes)) // 128 * 128)
        tk = min(tk, (D // 128) * 128)
        tm = max(8, (budget_bytes // (tk * elem_bytes)) // 8 * 8)

    # Keep >= ~8 batch tiles for large batches so v7x's two TensorCores both
    # stream and the pipeline has enough steps to hide DMA.  Only bites when
    # the whole array is small anyway.
    if B >= 64:
        tm = min(tm, max(8, ((pl.cdiv(B, 8) + 7) // 8) * 8))

    if tm >= B:
        tm = B  # full-dim block is always layout-legal
    return int(tm), int(tk)


def linear_probe_forward(x, weight, bias, *, tm=None, tk=None,
                         per_buffer_bytes=12 * 1024 * 1024,
                         vmem_limit_bytes=48 * 1024 * 1024,
                         chunk=512):
    """Forward of LinearProbe (Flatten -> identity Dropout -> Linear(D, 1)).

    x:      (B, ...) feature map; trailing dims flattened row-major (nn.Flatten).
    weight: (1, D) nn.Linear layout.  bias: (1,).
    Returns (B, 1) float32 logits.
    """
    B = int(x.shape[0])
    D = 1
    for s in x.shape[1:]:
        D *= int(s)

    # Native-dtype passthrough (bf16 inputs stream half the HBM bytes);
    # the kernel upcasts to f32 in-register per chunk.
    x_flat = x.reshape(B, D)
    w_row = weight.reshape(1, D)
    b2d = bias.reshape(1, 1).astype(jnp.float32)   # SMEM scalar

    elem = x_flat.dtype.itemsize
    auto_tm, auto_tk = _auto_tiles(B, D, elem, per_buffer_bytes)
    tm = int(tm) if tm is not None else auto_tm
    tk = int(tk) if tk is not None else auto_tk

    nb = pl.cdiv(B, tm)
    nk = pl.cdiv(D, tk)
    needs_d_mask = (D % tk) != 0        # only possible when the D axis is tiled
    chunk = int(chunk)                  # lanes per fused upcast+mul+reduce slab

    def kernel(x_ref, w_ref, b_ref, o_ref, acc_ref):
        k = pl.program_id(1)

        @pl.when(k == 0)
        def _init():
            acc_ref[...] = jnp.zeros_like(acc_ref)

        tm_blk, tk_blk = x_ref.shape
        n_full = tk_blk // chunk
        rem = tk_blk - n_full * chunk

        def chunk_sum(off):
            # Fused upcast + multiply + lane-reduce on a (tm, chunk) slab:
            # keeps f32 temporaries small instead of a full-tile product.
            xs = x_ref[:, pl.ds(off, chunk)].astype(jnp.float32)
            ws = w_ref[:, pl.ds(off, chunk)].astype(jnp.float32)
            prod = xs * ws
            if needs_d_mask:
                lane = jax.lax.broadcasted_iota(jnp.int32, prod.shape, 1)
                prod = jnp.where(k * tk + off + lane < D, prod, 0.0)
            return jnp.sum(prod, axis=-1, keepdims=True)

        acc = jnp.zeros((tm_blk, 1), jnp.float32)
        if n_full > 0:
            if n_full <= 64:
                # Static offsets -> zero-cost slices.
                for c in range(n_full):
                    acc = acc + chunk_sum(c * chunk)
            else:
                acc = jax.lax.fori_loop(
                    0, n_full,
                    lambda c, a: a + chunk_sum(pl.multiple_of(c * chunk, chunk)),
                    acc)
        if rem > 0:
            xs = x_ref[:, n_full * chunk:].astype(jnp.float32)
            ws = w_ref[:, n_full * chunk:].astype(jnp.float32)
            prod = xs * ws
            if needs_d_mask:
                lane = jax.lax.broadcasted_iota(jnp.int32, prod.shape, 1)
                prod = jnp.where(k * tk + n_full * chunk + lane < D, prod, 0.0)
            acc = acc + jnp.sum(prod, axis=-1, keepdims=True)

        acc_ref[...] += acc

        @pl.when(k == nk - 1)
        def _finalize():
            o_ref[...] = (acc_ref[...] + b_ref[0, 0]).astype(o_ref.dtype)

    out = pl.pallas_call(
        kernel,
        out_shape=jax.ShapeDtypeStruct((B, 1), jnp.float32),
        grid=(nb, nk),
        in_specs=[
            pl.BlockSpec((tm, tk), lambda i, k: (i, k)),             # x tile, pipelined
            pl.BlockSpec((1, tk), lambda i, k: (0, k)),              # weight row (resident)
            pl.BlockSpec(memory_space=pltpu.MemorySpace.SMEM),       # bias scalar
        ],
        out_specs=pl.BlockSpec((tm, 1), lambda i, k: (i, 0)),
        scratch_shapes=[pltpu.VMEM((tm, 1), jnp.float32)],           # per-row accumulator
        compiler_params=pltpu.CompilerParams(
            dimension_semantics=("parallel", "arbitrary"),
            vmem_limit_bytes=vmem_limit_bytes,
        ),
        cost_estimate=pl.CostEstimate(
            flops=2 * B * D,
            transcendentals=0,
            bytes_accessed=int(B * D * elem + D * w_row.dtype.itemsize + B * 4 + 4),
        ),
    )(x_flat, w_row, b2d)

    return out  # (B, 1) logits


if __name__ == "__main__":
    # Small shapes consistent with the module: a conv-feature-map-like input.
    B, C, H, W = 2, 4, 16, 16
    input_dim = C * H * W  # 1024

    key = jax.random.PRNGKey(0)
    kx, kw, kb = jax.random.split(key, 3)

    x = jax.random.normal(kx, (B, C, H, W), dtype=jnp.float32)

    # Deterministic nn.Linear-style init: U(-1/sqrt(D), 1/sqrt(D))
    bound = 1.0 / (input_dim ** 0.5)
    weight = jax.random.uniform(kw, (1, input_dim), minval=-bound, maxval=bound,
                                dtype=jnp.float32)
    bias = jax.random.uniform(kb, (1,), minval=-bound, maxval=bound,
                              dtype=jnp.float32)

    logits = linear_probe_forward(x, weight, bias)
    jax.block_until_ready(logits)

    # Reference in plain JAX (Flatten -> identity Dropout -> Linear).
    ref = x.reshape(B, -1) @ weight.T + bias
    assert logits.shape == (B, 1), logits.shape
    assert jnp.allclose(logits, ref, atol=1e-4, rtol=1e-4), (logits, ref)

    print("KERNEL_OK")
</pallas_src>

<mosaic_0001>
module attributes {stable_mosaic.version = 11 : i64} {
  func.func @kernel(%arg0: i32, %arg1: i32, %arg2: memref<2x1024xf32, #tpu.memory_space<vmem>>, %arg3: memref<1x1024xf32, #tpu.memory_space<vmem>>, %arg4: memref<1x1xf32, #tpu.memory_space<smem>>, %arg5: memref<2x1xf32, #tpu.memory_space<vmem>>, %arg6: memref<2x1xf32, #tpu.memory_space<vmem>>) attributes {dimension_semantics = [#tpu.dimension_semantics<parallel>, #tpu.dimension_semantics<arbitrary>], iteration_bounds = array<i64: 1, 1>, scalar_prefetch = 0 : i64, scratch_operands = 1 : i64, tpu.core_type = #tpu.core_type<tc>, window_params = [{transform_indices = @transform_0, window_bounds = array<i64: 2, 1024>}, {transform_indices = @transform_1, window_bounds = array<i64: 1, 1024>}, {transform_indices = @transform_2, window_bounds = array<i64: 1, 1>}, {transform_indices = @transform_3, window_bounds = array<i64: 2, 1>}]} {
    %c0_i32 = arith.constant 0 : i32
    %0 = arith.cmpi eq, %arg1, %c0_i32 : i32
    %1 = arith.extui %0 : i1 to i32
    %c0_i32_0 = arith.constant 0 : i32
    %2 = arith.cmpi ne, %1, %c0_i32_0 : i32
    scf.if %2 {
      %cst_15 = arith.constant 0.000000e+00 : f32
      %24 = vector.broadcast %cst_15 : f32 to vector<2x1xf32>
      %c0_16 = arith.constant 0 : index
      %c0_17 = arith.constant 0 : index
      %25 = vector.load %arg6[%c0_16, %c0_17] : memref<2x1xf32, #tpu.memory_space<vmem>>, vector<2x1xf32>
      tpu.vector_store %arg6[%c0_16, %c0_17], %24 {strides = array<i32>} : memref<2x1xf32, #tpu.memory_space<vmem>>, vector<2x1xf32>,
    } else {
    }
    %cst = arith.constant 0.000000e+00 : f32
    %3 = vector.broadcast %cst : f32 to vector<2x1xf32>
    %c0 = arith.constant 0 : index
    %c0_1 = arith.constant 0 : index
    %4 = vector.load %arg2[%c0, %c0_1] : memref<2x1024xf32, #tpu.memory_space<vmem>>, vector<2x512xf32>
    %c0_2 = arith.constant 0 : index
    %c0_3 = arith.constant 0 : index
    %5 = vector.load %arg3[%c0_2, %c0_3] : memref<1x1024xf32, #tpu.memory_space<vmem>>, vector<1x512xf32>
    %6 = vector.broadcast %5 : vector<1x512xf32> to vector<2x512xf32>
    %7 = arith.mulf %4, %6 : vector<2x512xf32>
    %cst_4 = arith.constant dense<0.000000e+00> : vector<2xf32>
    %8 = vector.multi_reduction <add>, %7, %cst_4 [1] : vector<2x512xf32> to vector<2xf32>
    %9 = vector.shape_cast %8 : vector<2xf32> to vector<2x1xf32>
    %10 = arith.addf %3, %9 : vector<2x1xf32>
    %c0_5 = arith.constant 0 : index
    %c512 = arith.constant 512 : index
    %11 = vector.load %arg2[%c0_5, %c512] : memref<2x1024xf32, #tpu.memory_space<vmem>>, vector<2x512xf32>
    %c0_6 = arith.constant 0 : index
    %c512_7 = arith.constant 512 : index
    %12 = vector.load %arg3[%c0_6, %c512_7] : memref<1x1024xf32, #tpu.memory_space<vmem>>, vector<1x512xf32>
    %13 = vector.broadcast %12 : vector<1x512xf32> to vector<2x512xf32>
    %14 = arith.mulf %11, %13 : vector<2x512xf32>
    %cst_8 = arith.constant dense<0.000000e+00> : vector<2xf32>
    %15 = vector.multi_reduction <add>, %14, %cst_8 [1] : vector<2x512xf32> to vector<2xf32>
    %16 = vector.shape_cast %15 : vector<2xf32> to vector<2x1xf32>
    %17 = arith.addf %10, %16 : vector<2x1xf32>
    %c0_9 = arith.constant 0 : index
    %c0_10 = arith.constant 0 : index
    %18 = vector.load %arg6[%c0_9, %c0_10] : memref<2x1xf32, #tpu.memory_space<vmem>>, vector<2x1xf32>
    %19 = arith.addf %18, %17 : vector<2x1xf32>
    %c0_11 = arith.constant 0 : index
    %c0_12 = arith.constant 0 : index
    %20 = vector.load %arg6[%c0_11, %c0_12] : memref<2x1xf32, #tpu.memory_space<vmem>>, vector<2x1xf32>
    tpu.vector_store %arg6[%c0_11, %c0_12], %19 {strides = array<i32>} : memref<2x1xf32, #tpu.memory_space<vmem>>, vector<2x1xf32>,
    %c0_i32_13 = arith.constant 0 : i32
    %21 = arith.cmpi eq, %arg1, %c0_i32_13 : i32
    %22 = arith.extui %21 : i1 to i32
    %c0_i32_14 = arith.constant 0 : i32
    %23 = arith.cmpi ne, %22, %c0_i32_14 : i32
    scf.if %23 {
      %c0_15 = arith.constant 0 : index
      %c0_16 = arith.constant 0 : index
      %24 = vector.load %arg6[%c0_15, %c0_16] : memref<2x1xf32, #tpu.memory_space<vmem>>, vector<2x1xf32>
      %c0_17 = arith.constant 0 : index
      %c0_18 = arith.constant 0 : index
      %25 = memref.load %arg4[%c0_17, %c0_18] : memref<1x1xf32, #tpu.memory_space<smem>>
      %26 = vector.broadcast %25 : f32 to vector<2x1xf32>
      %27 = arith.addf %24, %26 : vector<2x1xf32>
      %c0_19 = arith.constant 0 : index
      %c0_20 = arith.constant 0 : index
      %28 = vector.load %arg5[%c0_19, %c0_20] : memref<2x1xf32, #tpu.memory_space<vmem>>, vector<2x1xf32>
      tpu.vector_store %arg5[%c0_19, %c0_20], %27 {strides = array<i32>} : memref<2x1xf32, #tpu.memory_space<vmem>>, vector<2x1xf32>,
    } else {
    }
    return
  }
  func.func @transform_0(%arg0: i32, %arg1: i32) -> (i32, i32) {
    %c0_i32 = arith.constant 0 : i32
    return %arg0, %arg1 : i32, i32
  }
  func.func @transform_1(%arg0: i32, %arg1: i32) -> (i32, i32) {
    %c0_i32 = arith.constant 0 : i32
    %c0_i32_0 = arith.constant 0 : i32
    return %c0_i32, %arg1 : i32, i32
  }
  func.func @transform_2(%arg0: i32, %arg1: i32) -> (i32, i32) {
    %c0_i32 = arith.constant 0 : i32
    %c0_i32_0 = arith.constant 0 : i32
    %c0_i32_1 = arith.constant 0 : i32
    return %c0_i32, %c0_i32_0 : i32, i32
  }
  func.func @transform_3(%arg0: i32, %arg1: i32) -> (i32, i32) {
    %c0_i32 = arith.constant 0 : i32
    %c0_i32_0 = arith.constant 0 : i32
    return %arg0, %c0_i32 : i32, i32
  }
}

</mosaic_0001>

<llo_original>
// kernel: tpu_custom_call.1
$region0: #{tpu_custom_call.1}
  #allocation0 [shape = 'u32[]', space=smem, size = 0x4, offset = 0x4, fixed_abs, tag = 'smem constant byte address 0x4 - core index']
  #allocation1 [shape = 'u32[144,128]{1,0:T(1,128)}', space=vmem, size = 0x12000, scoped, tag = 'internal scratch']
  #allocation2 [shape = 'f32[2,1]{1,0:T(2,128)}', space=vmem, size = 0x400, scoped, tag = 'scratch operand']
  #allocation3 [shape = 'f32[1,1]{1,0:T(1,128)S(6)}', space=smem, size = 0x200, scoped, tag = 'scoped memory for tpu_custom_call.1']
  %s0 = inlined_call_operand.hbm [shape: f32[2,1024], index: 0, kind: input, shape index: {}]
  %s1 = inlined_call_operand.hbm [shape: f32[1,1024], index: 1, kind: input, shape index: {}]
  %s2 = inlined_call_operand.<no memory space> [shape: f32[1,1], index: 2, kind: input, shape index: {}]
  %s3 = inlined_call_operand.vmem [shape: f32[2,1], index: 3, kind: output, shape index: {}]
  %s4 = sld [smem:[#allocation0]]
  $region38: #{tpu_custom_call.1} parent=0
    _
  %s6 = ssub.s32 1, %s4
  %s7 = scalar_select 0, %s6, %s4
  %8 = sst [smem:[#allocation3]] %s2
  $region1: #{tpu_custom_call.1} parent=0
    #allocation4 [shape = 'u8[8192]{0}', space=vmem, size = 0x2000, scoped, tag = 'input window, operand 0, single buffered']
    #allocation5 [shape = 's32[1]{0}', space=sflag, size = 0x4, scoped, tag = 'scoped memory for tpu_custom_call.1']
    #allocation6 [shape = 'u8[4096]{0}', space=vmem, size = 0x1000, scoped, tag = 'input window, operand 1, single buffered']
    #allocation7 [shape = 's32[1]{0}', space=sflag, size = 0x4, scoped, tag = 'scoped memory for tpu_custom_call.1']
    %9 = vsyncpa [#allocation5], 0
    %10 = vsyncpa [#allocation7], 0
    // Predicated region
    $region2: #{tpu_custom_call.1} parent=1 // pred_check
      _
    $region3: #{tpu_custom_call.1} parent=1 // pred_check_branch
      %12 = sbr.rel (0) target = $region5
    $region4: #{tpu_custom_call.1} parent=1 // pred_region
      %s14 = ssub.s32 256, 256
      %15 = vsyncadd [#allocation5], %s14
      %s17 = sshll.u32 [#allocation4], 4
      %s18 = int_to_ptr.vmem [resolvable:$true] %s17
      %20 = dma.hbm_to_vmem [thread:$0]  %s0, 256, %s18, [#allocation5]
    $region5: #{tpu_custom_call.1} parent=1 // pred_fallthru
      _
    // Predicated region
    $region6: #{tpu_custom_call.1} parent=1 // pred_check
      _
    $region7: #{tpu_custom_call.1} parent=1 // pred_check_branch
      %22 = sbr.rel (0) target = $region9
    $region8: #{tpu_custom_call.1} parent=1 // pred_region
      %s24 = ssub.s32 128, 128
      %25 = vsyncadd [#allocation7], %s24
      %s27 = sshll.u32 [#allocation6], 4
      %s28 = int_to_ptr.vmem [resolvable:$true] %s27
      %30 = dma.hbm_to_vmem [thread:$0]  %s1, 128, %s28, [#allocation7]
    $region9: #{tpu_custom_call.1} parent=1 // pred_fallthru
      _
    // Predicated region
    $region10: #{tpu_custom_call.1} parent=1 // pred_check
      _
    $region11: #{tpu_custom_call.1} parent=1 // pred_check_branch
      %32 = sbr.rel (0) target = $region13
    $region12: #{tpu_custom_call.1} parent=1 // pred_region
      _
    $region13: #{tpu_custom_call.1} parent=1 // pred_fallthru
      _
    // Predicated region
    $region14: #{tpu_custom_call.1} parent=1 // pred_check
      _
    $region15: #{tpu_custom_call.1} parent=1 // pred_check_branch
      %34 = sbr.rel (0) target = $region17
    $region16: #{tpu_custom_call.1} parent=1 // pred_region
      %35 = dma.done [#allocation5], 256
    $region17: #{tpu_custom_call.1} parent=1 // pred_fallthru
      _
    // Predicated region
    $region18: #{tpu_custom_call.1} parent=1 // pred_check
      _
    $region19: #{tpu_custom_call.1} parent=1 // pred_check_branch
      %37 = sbr.rel (0) target = $region21
    $region20: #{tpu_custom_call.1} parent=1 // pred_region
      %38 = dma.done [#allocation7], 128
    $region21: #{tpu_custom_call.1} parent=1 // pred_fallthru
      _
    %p39 = scmp.eq.s32.totalorder 0, 0
    // Predicated region
    $region22: #{tpu_custom_call.1} parent=1 // pred_check
      %p40 = pneg %p39
    $region23: #{tpu_custom_call.1} parent=1 // pred_check_branch
      %42 = sbr.rel (%p40) target = $region25
    $region24: #{tpu_custom_call.1} parent=1 // pred_region
      %vm43 = vcmask 1024
      %44 = vst.msk [vmem:[#allocation2] sm:$0x3] %vm43, 0.0
    $region25: #{tpu_custom_call.1} parent=1 // pred_fallthru
      _
    %v45 = vld [vmem:[#allocation4] sm:$0xff]
    %v46 = vld [vmem:[#allocation6] sm:$0xf]
    %v48 = vlaneseq
    %v49 = vshrl.u32 %v48, 7
    %v50 = vsub.s32 0, %v49
    %v51 = vrot.slane %v46, %v50
    %v52 = vlaneseq
    %v53 = vshrl.u32 %v52, 7
    %v54 = vsub.s32 1, %v53
    %v55 = vrot.slane %v46, %v54
    %v56 = vlaneseq
    %v57 = vshrl.u32 %v56, 7
    %v58 = vsub.s32 2, %v57
    %v59 = vrot.slane %v46, %v58
    %v60 = vlaneseq
    %v61 = vshrl.u32 %v60, 7
    %v62 = vsub.s32 3, %v61
    %v63 = vrot.slane %v46, %v62
    %v64 = vcombine.low %v51, %v55
    %v65 = vcombine.low %v59, %v63
    %v67 = vunpack.c.l.s4 1983009808
    %v68 = vunpack.c.0.s8 %v67
    %v69 = vlaneseq
    %v70 = vshrl.u32 %v69, 7
    %v71 = vsub.s32 %v68, %v70
    %v72 = vrot.slane %v64, %v71
    %v74 = vunpack.c.l.s4 1983009808
    %v75 = vunpack.c.0.s8 %v74
    %v76 = vlaneseq
    %v77 = vshrl.u32 %v76, 7
    %v78 = vsub.s32 %v75, %v77
    %v79 = vrot.slane %v65, %v78
    %v80 = vcombine.low %v72, %v79
    %v82 = vmul.f32 %v45, %v80
    %v84 = vcombine.high %v82, %v82
    %v86 = vunpack.c.l.s4 1983009808
    %v87 = vunpack.c.0.s8 %v86
    %v88 = vlaneseq
    %v89 = vshrl.u32 %v88, 7
    %v90 = vsub.s32 %v87, %v89
    %v91 = vrot.slane %v82, %v90
    %v93 = vunpack.c.l.s4 1983009808
    %v94 = vunpack.c.0.s8 %v93
    %v95 = vlaneseq
    %v96 = vshrl.u32 %v95, 7
    %v97 = vsub.s32 %v94, %v96
    %v98 = vrot.slane %v84, %v97
    %v99 = vcombine.high %v91, %v91
    %v100 = vcombine.high %v98, %v98
    %vm105 = vcmask 1041408
    %v106 = vsel %vm105, %v91, 0.0
    %v107 = vsel %vm105, %v99, 0.0
    %v108 = vadd.f32 %v106, %v107
    %v109 = vsel %vm105, %v98, 0.0
    %v110 = vadd.f32 %v108, %v109
    %v111 = vsel %vm105, %v100, 0.0
    %v112 = vadd.f32 %v110, %v111
    %113 = vadd.xlane.f32.xlu0 %v112
    %v114 = vpop.xlane.xlu0 %113
    %v115 = vadd.f32 %v114, 0.0
    %v116 = vld [vmem:[#allocation4 + $0x8] sm:$0xff]
    %v117 = vld [vmem:[#allocation6 + $0x4] sm:$0xf]
    %v119 = vlaneseq
    %v120 = vshrl.u32 %v119, 7
    %v121 = vsub.s32 0, %v120
    %v122 = vrot.slane %v117, %v121
    %v123 = vlaneseq
    %v124 = vshrl.u32 %v123, 7
    %v125 = vsub.s32 1, %v124
    %v126 = vrot.slane %v117, %v125
    %v127 = vlaneseq
    %v128 = vshrl.u32 %v127, 7
    %v129 = vsub.s32 2, %v128
    %v130 = vrot.slane %v117, %v129
    %v131 = vlaneseq
    %v132 = vshrl.u32 %v131, 7
    %v133 = vsub.s32 3, %v132
    %v134 = vrot.slane %v117, %v133
    %v135 = vcombine.low %v122, %v126
    %v136 = vcombine.low %v130, %v134
    %v138 = vunpack.c.l.s4 1983009808
    %v139 = vunpack.c.0.s8 %v138
    %v140 = vlaneseq
    %v141 = vshrl.u32 %v140, 7
    %v142 = vsub.s32 %v139, %v141
    %v143 = vrot.slane %v135, %v142
    %v145 = vunpack.c.l.s4 1983009808
    %v146 = vunpack.c.0.s8 %v145
    %v147 = vlaneseq
    %v148 = vshrl.u32 %v147, 7
    %v149 = vsub.s32 %v146, %v148
    %v150 = vrot.slane %v136, %v149
    %v151 = vcombine.low %v143, %v150
    %v153 = vmul.f32 %v116, %v151
    %v155 = vcombine.high %v153, %v153
    %v157 = vunpack.c.l.s4 1983009808
    %v158 = vunpack.c.0.s8 %v157
    %v159 = vlaneseq
    %v160 = vshrl.u32 %v159, 7
    %v161 = vsub.s32 %v158, %v160
    %v162 = vrot.slane %v153, %v161
    %v164 = vunpack.c.l.s4 1983009808
    %v165 = vunpack.c.0.s8 %v164
    %v166 = vlaneseq
    %v167 = vshrl.u32 %v166, 7
    %v168 = vsub.s32 %v165, %v167
    %v169 = vrot.slane %v155, %v168
    %v170 = vcombine.high %v162, %v162
    %v171 = vcombine.high %v169, %v169
    %v176 = vsel %vm105, %v162, 0.0
    %v177 = vsel %vm105, %v170, 0.0
    %v178 = vadd.f32 %v176, %v177
    %v179 = vsel %vm105, %v169, 0.0
    %v180 = vadd.f32 %v178, %v179
    %v181 = vsel %vm105, %v171, 0.0
    %v182 = vadd.f32 %v180, %v181
    %183 = vadd.xlane.f32.xlu0 %v182
    %v184 = vpop.xlane.xlu0 %183
    %v185 = vadd.f32 %v115, %v184
    %v186 = vld [vmem:[#allocation2] sm:$0x3]
    %v187 = vadd.f32 %v186, %v185
    %vm188 = vcmask 1024
    %189 = vst.msk [vmem:[#allocation2] sm:$0x3] %vm188, %v187
    // Predicated region
    $region26: #{tpu_custom_call.1} parent=1 // pred_check
      %p190 = pneg %p39
    $region27: #{tpu_custom_call.1} parent=1 // pred_check_branch
      %192 = sbr.rel (%p190) target = $region29
    $region28: #{tpu_custom_call.1} parent=1 // pred_region
      %v193 = vld [vmem:[#allocation2] sm:$0x3]
      %s194 = sld [smem:[#allocation3]]
      %v195 = vstv %s194
      %v196 = vadd.f32 %v193, %v195
      %197 = vst.msk [vmem:[%s3] sm:$0x3] %vm188, %v196
    $region29: #{tpu_custom_call.1} parent=1 // pred_fallthru
      _
    // Predicated region
    $region30: #{tpu_custom_call.1} parent=1 // pred_check
      _
    $region31: #{tpu_custom_call.1} parent=1 // pred_check_branch
      %199 = sbr.rel (0) target = $region33
    $region32: #{tpu_custom_call.1} parent=1 // pred_region
      _
    $region33: #{tpu_custom_call.1} parent=1 // pred_fallthru
      _
    // Predicated region
    $region34: #{tpu_custom_call.1} parent=1 // pred_check
      _
    $region35: #{tpu_custom_call.1} parent=1 // pred_check_branch
      %201 = sbr.rel (0) target = $region37
    $region36: #{tpu_custom_call.1} parent=1 // pred_region
      _
    $region37: #{tpu_custom_call.1} parent=1 // pred_fallthru
      _
    %202 = vsyncpa [#allocation5], 1
    %203 = vsyncpa [#allocation7], 1

</llo_original>
